<compile_context>
chip_gen: v7x
topology: tpu7x:2x2x1
jax: 0.10.0
libtpu: 0.0.40
codegen_flags: <defaults>
</compile_context>

<pallas_src>
import numpy as np
import jax
import jax.numpy as jnp
from jax import lax
from jax.experimental import pallas as pl
from jax.experimental.pallas import tpu as pltpu


def _mouth_loss_kernel(pts_ref, edges_ref, tab_ref, out_ref):
    f32 = jnp.float32
    inf = f32(jnp.inf)

    n = pts_ref.shape[0]            # number of mouth landmarks
    ne = edges_ref.shape[1]         # number of edges

    px = pts_ref[:, 0:1]            # (N, 1) landmark x
    py = pts_ref[:, 1:2]            # (N, 1) landmark y

    ex1 = edges_ref[0:1, :]         # (1, E) edge endpoint coordinates
    ey1 = edges_ref[1:2, :]
    ex2 = edges_ref[2:3, :]
    ey2 = edges_ref[3:4, :]

    # Line through each edge (min2p ordering cancels out in getexposeY / getX).
    # Single-row divide; reciprocal kept so the per-landmark (N,E) op is a multiply.
    a = (ey1 - ey2) / (ex1 - ex2)                               # (1, E)
    b = ey1 - a * ex1
    inv_a = f32(1.0) / a
    # TODO(synk): vertical / degenerate edges give a = +-inf, b/inv_a products = NaN,
    # exactly like the PyTorch reference; no extra guarding is added.

    e_idx_f = lax.broadcasted_iota(jnp.int32, (1, ne), 1).astype(f32)

    # ---- getexpose: first edge whose x-range strictly contains p.x, else last edge.
    xmin = jnp.minimum(ex1, ex2)
    xmax = jnp.maximum(ex1, ex2)
    mask_x = (px > xmin) & (px < xmax)                          # (N, E)
    sel = jnp.min(jnp.where(mask_x, e_idx_f, f32(ne - 1)),
                  axis=1, keepdims=True)                        # (N, 1) first match / fallback
    onehot = e_idx_f == sel                                     # (N, E)
    ycand = a * px + b
    expose_y = jnp.sum(jnp.where(onehot, ycand, f32(0.0)),
                       axis=1, keepdims=True)                   # (N, 1)

    l1 = jnp.abs(py - expose_y)                                 # distance(p, expose)
    cy = (py + expose_y) * f32(0.5)                             # centre1.y
    cx = px                                                     # centre1.x == p.x

    # ---- getpoints: edges strictly crossed by the horizontal line y = centre.y.
    ymin = jnp.minimum(ey1, ey2)
    ymax = jnp.maximum(ey1, ey2)
    mask_y = (cy > ymin) & (cy < ymax)                          # (N, E)
    point_x = (cy - b) * inv_a                                  # (N, E), multiply (not divide)

    # Side split mirrors the reference branch `if pointe.x < centre.x: inf else: spu`.
    is_inf_side = point_x < cx
    inf_mask = mask_y & is_inf_side
    spu_mask = mask_y & jnp.logical_not(is_inf_side)
    n_inf = jnp.sum(inf_mask.astype(f32), axis=1, keepdims=True)
    n_spu = jnp.sum(spu_mask.astype(f32), axis=1, keepdims=True)
    count = n_spu + n_inf                                       # total crossings

    min_spu = jnp.min(jnp.where(spu_mask, point_x, inf), axis=1, keepdims=True)
    max_inf = jnp.max(jnp.where(inf_mask, point_x, -inf), axis=1, keepdims=True)
    x_max_all = jnp.max(jnp.where(mask_y, point_x, -inf), axis=1, keepdims=True)
    x_min_all = jnp.min(jnp.where(mask_y, point_x, inf), axis=1, keepdims=True)

    eq2 = count == f32(2.0)
    gt2 = (count > f32(2.0)) & (n_spu > f32(0.0)) & (n_inf > f32(0.0))
    valid_pts = eq2 | gt2

    # max-min >= 0 and min_spu >= centre.x > max_inf in their gated branches; abs dropped.
    l2 = jnp.where(eq2, x_max_all - x_min_all, min_spu - max_inf)

    # Ref = (1, 1); every crossing point has y == centre.y, so d1/d2 collapse to abs.
    d1 = jnp.abs(cy - f32(1.0))
    d2 = jnp.abs(cx - f32(1.0))

    # ---- match against TableR[0]: al = |L1-t3| + |L2-t4| + |d1-t5| + |d2-t6|
    # TODO(synk): original only defines `newele` when L1 != 0 and L2 != 0 (stale/undefined
    # otherwise); here the current L1/L2/d1/d2 values are always used.
    t_l1 = tab_ref[0:1, :]
    t_l2 = tab_ref[1:2, :]
    t_d1 = tab_ref[2:3, :]
    t_d2 = tab_ref[3:4, :]
    al = (jnp.abs(l1 - t_l1) + jnp.abs(l2 - t_l2)
          + jnp.abs(d1 - t_d1) + jnp.abs(d2 - t_d2))            # (N, K)
    min_al = jnp.min(al, axis=1, keepdims=True)                 # (N, 1)

    # ---- accumulation: `error` is a running minimum carried ACROSS landmarks,
    # added to the total only on landmarks with valid getpoints (prefix-min + masked sum).
    m = jnp.where(valid_pts, min_al, inf)                       # (N, 1)
    ri = lax.broadcasted_iota(jnp.int32, (n, n), 0)
    ci = lax.broadcasted_iota(jnp.int32, (n, n), 1)
    # transpose m (N,1) -> (1,N) via diagonal-select + sublane min (avoids XLU transpose)
    m_row = jnp.min(jnp.where(ri == ci, m, inf), axis=0, keepdims=True)
    prefix = jnp.where(ci <= ri, m_row, inf)                    # (N, N)
    running = jnp.min(prefix, axis=1, keepdims=True)            # running[i] = min_{j<=i, valid j}

    contrib = jnp.where(valid_pts, running, f32(0.0))
    # (1,1) VMEM output (an SMEM scalar output would also work; kept VMEM for robustness).
    out_ref[...] = jnp.sum(contrib, axis=0, keepdims=True)


def make_mouth_loss(table_r, edges, list_all):
    """Build a jitted `forward(verts) -> scalar loss` closure.

    table_r  : (1, K, 7) reference table; columns 3..6 = (L1, L2, d1, d2)   [static]
    edges    : (E, 2) int vertex-index pairs (edges json from __init__)     [static]
    list_all : (N,) unique vertex indices of the mouth contour              [static]
    """
    # Constant packing done once on host (numpy): TableR / edges / listAll never change.
    tab_np = np.asarray(table_r, np.float32)[0]                 # (K, 7)
    tab_rows = np.ascontiguousarray(tab_np[:, 3:7].T)           # (4, K): rows L1, L2, d1, d2
    edges_np = np.asarray(edges, np.int64)                      # (E, 2)
    list_np = np.asarray(list_all, np.int32)                    # (N,)

    # Flat indices so the edge endpoint rows come from ONE 1-D gather directly in the
    # (4, E) lane-major layout the kernel expects (rows ex1, ey1, ex2, ey2); avoids the
    # gather->transpose->reshape op chain of the previous version.
    flat = np.stack([edges_np[:, 0] * 2 + 0,
                     edges_np[:, 0] * 2 + 1,
                     edges_np[:, 1] * 2 + 0,
                     edges_np[:, 1] * 2 + 1], axis=0).astype(np.int32)   # (4, E)

    tab_dev = jnp.asarray(tab_rows)
    flat_idx = jnp.asarray(flat)
    list_idx = jnp.asarray(list_np)

    # Gridless single-invocation call: whole arrays live in VMEM, no pipeline machinery.
    pallas_fn = pl.pallas_call(
        _mouth_loss_kernel,
        out_shape=jax.ShapeDtypeStruct((1, 1), jnp.float32),
        in_specs=[pl.BlockSpec(memory_space=pltpu.MemorySpace.VMEM)] * 3,
        out_specs=pl.BlockSpec(memory_space=pltpu.MemorySpace.VMEM),
    )

    @jax.jit
    def forward(verts):
        # TODO(synk): cretae_obj (.obj dump when epoch % 5 == 0 and pth == 674) is host
        # file I/O with no Pallas equivalent; omitted.
        verts2d = jnp.asarray(verts, jnp.float32)[:, :2]        # deleteaxeZ
        pts = verts2d[list_idx]                                 # (N, 2) landmark (x, y)
        e_rows = verts2d.reshape(-1)[flat_idx]                  # (4, E): ex1, ey1, ex2, ey2
        return pallas_fn(pts, e_rows, tab_dev)[0, 0]

    return forward


if __name__ == "__main__":
    key = jax.random.PRNGKey(0)
    k1, k2, k3 = jax.random.split(key, 3)

    # Deterministic synthetic "mouth": ring of M contour vertices (ellipse + noise),
    # plus extra unused mesh vertices. Replaces the edges json / .pt loading.
    M = 20          # contour vertices -> listAll
    V = 32          # total mesh vertices
    theta = np.linspace(0.0, 2.0 * np.pi, M, endpoint=False)
    contour = np.stack([0.5 + 0.30 * np.cos(theta),
                        0.5 + 0.15 * np.sin(theta)], axis=1).astype(np.float32)
    contour = contour + 0.01 * np.asarray(jax.random.normal(k1, (M, 2)), np.float32)
    extra = np.asarray(jax.random.uniform(k2, (V - M, 2)), np.float32)
    verts2d = np.concatenate([contour, extra], axis=0)
    verts = np.concatenate([verts2d, np.zeros((V, 1), np.float32)], axis=1)   # (V, 3)

    edges = np.array([[i, (i + 1) % M] for i in range(M)], dtype=np.int32)    # (E, 2)
    list_all = np.unique(edges.reshape(-1))                                   # mimics __init__

    K = 8
    table_r = np.asarray(jax.random.uniform(k3, (1, K, 7), minval=0.05, maxval=0.5),
                         np.float32)                                          # (1, K, 7)

    mouth_loss = make_mouth_loss(table_r, edges, list_all)
    loss = jax.block_until_ready(mouth_loss(jnp.asarray(verts)))
    print("KERNEL_OK")
</pallas_src>

<mosaic_0001>
module attributes {stable_mosaic.version = 11 : i64} {
  func.func @_mouth_loss_kernel(%arg0: memref<20x2xf32, #tpu.memory_space<vmem>>, %arg1: memref<4x20xf32, #tpu.memory_space<vmem>>, %arg2: memref<4x8xf32, #tpu.memory_space<vmem>>, %arg3: memref<1x1xf32, #tpu.memory_space<vmem>>) attributes {dimension_semantics = [], scalar_prefetch = 0 : i64, scratch_operands = 0 : i64, tpu.core_type = #tpu.core_type<tc>} {
    %c0 = arith.constant 0 : index
    %c0_0 = arith.constant 0 : index
    %0 = vector.load %arg0[%c0, %c0_0] : memref<20x2xf32, #tpu.memory_space<vmem>>, vector<20x1xf32>
    %c0_1 = arith.constant 0 : index
    %c1 = arith.constant 1 : index
    %1 = vector.load %arg0[%c0_1, %c1] : memref<20x2xf32, #tpu.memory_space<vmem>>, vector<20x1xf32>
    %c0_2 = arith.constant 0 : index
    %c0_3 = arith.constant 0 : index
    %2 = vector.load %arg1[%c0_2, %c0_3] : memref<4x20xf32, #tpu.memory_space<vmem>>, vector<1x20xf32>
    %c1_4 = arith.constant 1 : index
    %c0_5 = arith.constant 0 : index
    %3 = vector.load %arg1[%c1_4, %c0_5] : memref<4x20xf32, #tpu.memory_space<vmem>>, vector<1x20xf32>
    %c2 = arith.constant 2 : index
    %c0_6 = arith.constant 0 : index
    %4 = vector.load %arg1[%c2, %c0_6] : memref<4x20xf32, #tpu.memory_space<vmem>>, vector<1x20xf32>
    %c3 = arith.constant 3 : index
    %c0_7 = arith.constant 0 : index
    %5 = vector.load %arg1[%c3, %c0_7] : memref<4x20xf32, #tpu.memory_space<vmem>>, vector<1x20xf32>
    %6 = arith.subf %3, %5 : vector<1x20xf32>
    %7 = arith.subf %2, %4 : vector<1x20xf32>
    %8 = arith.divf %6, %7 : vector<1x20xf32>
    %9 = arith.mulf %8, %2 : vector<1x20xf32>
    %10 = arith.subf %3, %9 : vector<1x20xf32>
    %cst = arith.constant 1.000000e+00 : f32
    %11 = vector.broadcast %cst : f32 to vector<1x20xf32>
    %12 = arith.divf %11, %8 : vector<1x20xf32>
    %13 = tpu.iota {dimensions = array<i32: 1>} : vector<1x20xi32>
    %14 = arith.sitofp %13 : vector<1x20xi32> to vector<1x20xf32>
    %15 = arith.minimumf %2, %4 : vector<1x20xf32>
    %16 = arith.maximumf %2, %4 : vector<1x20xf32>
    %17 = vector.broadcast %0 : vector<20x1xf32> to vector<20x20xf32>
    %18 = vector.broadcast %15 : vector<1x20xf32> to vector<20x20xf32>
    %19 = arith.cmpf ogt, %17, %18 : vector<20x20xf32>
    %20 = vector.broadcast %0 : vector<20x1xf32> to vector<20x20xf32>
    %21 = vector.broadcast %16 : vector<1x20xf32> to vector<20x20xf32>
    %22 = arith.cmpf olt, %20, %21 : vector<20x20xf32>
    %23 = arith.andi %19, %22 : vector<20x20xi1>
    %cst_8 = arith.constant 1.900000e+01 : f32
    %24 = vector.shape_cast %14 : vector<1x20xf32> to vector<1x20xf32>
    %25 = vector.broadcast %24 : vector<1x20xf32> to vector<20x20xf32>
    %26 = vector.broadcast %cst_8 : f32 to vector<20x20xf32>
    %27 = arith.select %23, %25, %26 : vector<20x20xi1>, vector<20x20xf32>
    %cst_9 = arith.constant dense<0x7F800000> : vector<20xf32>
    %28 = vector.multi_reduction <minimumf>, %27, %cst_9 [1] : vector<20x20xf32> to vector<20xf32>
    %29 = vector.shape_cast %28 : vector<20xf32> to vector<20x1xf32>
    %30 = vector.broadcast %14 : vector<1x20xf32> to vector<20x20xf32>
    %31 = vector.broadcast %29 : vector<20x1xf32> to vector<20x20xf32>
    %32 = arith.cmpf oeq, %30, %31 : vector<20x20xf32>
    %33 = vector.broadcast %8 : vector<1x20xf32> to vector<20x20xf32>
    %34 = vector.broadcast %0 : vector<20x1xf32> to vector<20x20xf32>
    %35 = arith.mulf %33, %34 : vector<20x20xf32>
    %36 = vector.broadcast %10 : vector<1x20xf32> to vector<20x20xf32>
    %37 = arith.addf %35, %36 : vector<20x20xf32>
    %cst_10 = arith.constant 0.000000e+00 : f32
    %38 = vector.broadcast %cst_10 : f32 to vector<20x20xf32>
    %39 = arith.select %32, %37, %38 : vector<20x20xi1>, vector<20x20xf32>
    %cst_11 = arith.constant dense<0.000000e+00> : vector<20xf32>
    %40 = vector.multi_reduction <add>, %39, %cst_11 [1] : vector<20x20xf32> to vector<20xf32>
    %41 = vector.shape_cast %40 : vector<20xf32> to vector<20x1xf32>
    %42 = arith.subf %1, %41 : vector<20x1xf32>
    %43 = math.absf %42 : vector<20x1xf32>
    %44 = arith.addf %1, %41 : vector<20x1xf32>
    %cst_12 = arith.constant 5.000000e-01 : f32
    %45 = vector.broadcast %cst_12 : f32 to vector<20x1xf32>
    %46 = arith.mulf %44, %45 : vector<20x1xf32>
    %47 = arith.minimumf %3, %5 : vector<1x20xf32>
    %48 = arith.maximumf %3, %5 : vector<1x20xf32>
    %49 = vector.broadcast %46 : vector<20x1xf32> to vector<20x20xf32>
    %50 = vector.broadcast %47 : vector<1x20xf32> to vector<20x20xf32>
    %51 = arith.cmpf ogt, %49, %50 : vector<20x20xf32>
    %52 = vector.broadcast %46 : vector<20x1xf32> to vector<20x20xf32>
    %53 = vector.broadcast %48 : vector<1x20xf32> to vector<20x20xf32>
    %54 = arith.cmpf olt, %52, %53 : vector<20x20xf32>
    %55 = arith.andi %51, %54 : vector<20x20xi1>
    %56 = vector.broadcast %46 : vector<20x1xf32> to vector<20x20xf32>
    %57 = vector.broadcast %10 : vector<1x20xf32> to vector<20x20xf32>
    %58 = arith.subf %56, %57 : vector<20x20xf32>
    %59 = vector.broadcast %12 : vector<1x20xf32> to vector<20x20xf32>
    %60 = arith.mulf %58, %59 : vector<20x20xf32>
    %61 = vector.broadcast %0 : vector<20x1xf32> to vector<20x20xf32>
    %62 = arith.cmpf olt, %60, %61 : vector<20x20xf32>
    %63 = arith.andi %55, %62 : vector<20x20xi1>
    %cst_13 = arith.constant dense<true> : vector<20x20xi1>
    %64 = arith.xori %62, %cst_13 : vector<20x20xi1>
    %65 = arith.andi %55, %64 : vector<20x20xi1>
    %66 = arith.extui %63 : vector<20x20xi1> to vector<20x20xi32>
    %67 = arith.sitofp %66 : vector<20x20xi32> to vector<20x20xf32>
    %cst_14 = arith.constant dense<0.000000e+00> : vector<20xf32>
    %68 = vector.multi_reduction <add>, %67, %cst_14 [1] : vector<20x20xf32> to vector<20xf32>
    %69 = vector.shape_cast %68 : vector<20xf32> to vector<20x1xf32>
    %70 = arith.extui %65 : vector<20x20xi1> to vector<20x20xi32>
    %71 = arith.sitofp %70 : vector<20x20xi32> to vector<20x20xf32>
    %cst_15 = arith.constant dense<0.000000e+00> : vector<20xf32>
    %72 = vector.multi_reduction <add>, %71, %cst_15 [1] : vector<20x20xf32> to vector<20xf32>
    %73 = vector.shape_cast %72 : vector<20xf32> to vector<20x1xf32>
    %74 = arith.addf %73, %69 : vector<20x1xf32>
    %cst_16 = arith.constant 0x7F800000 : f32
    %75 = vector.broadcast %cst_16 : f32 to vector<20x20xf32>
    %76 = arith.select %65, %60, %75 : vector<20x20xi1>, vector<20x20xf32>
    %cst_17 = arith.constant dense<0x7F800000> : vector<20xf32>
    %77 = vector.multi_reduction <minimumf>, %76, %cst_17 [1] : vector<20x20xf32> to vector<20xf32>
    %78 = vector.shape_cast %77 : vector<20xf32> to vector<20x1xf32>
    %cst_18 = arith.constant 0.000000e+00 : f32
    %cst_19 = arith.constant 0x7F800000 : f32
    %79 = arith.subf %cst_18, %cst_19 : f32
    %80 = vector.broadcast %79 : f32 to vector<20x20xf32>
    %81 = arith.select %63, %60, %80 : vector<20x20xi1>, vector<20x20xf32>
    %cst_20 = arith.constant dense<0xFF800000> : vector<20xf32>
    %82 = vector.multi_reduction <maximumf>, %81, %cst_20 [1] : vector<20x20xf32> to vector<20xf32>
    %83 = vector.shape_cast %82 : vector<20xf32> to vector<20x1xf32>
    %cst_21 = arith.constant 0.000000e+00 : f32
    %cst_22 = arith.constant 0x7F800000 : f32
    %84 = arith.subf %cst_21, %cst_22 : f32
    %85 = vector.broadcast %84 : f32 to vector<20x20xf32>
    %86 = arith.select %55, %60, %85 : vector<20x20xi1>, vector<20x20xf32>
    %cst_23 = arith.constant dense<0xFF800000> : vector<20xf32>
    %87 = vector.multi_reduction <maximumf>, %86, %cst_23 [1] : vector<20x20xf32> to vector<20xf32>
    %88 = vector.shape_cast %87 : vector<20xf32> to vector<20x1xf32>
    %cst_24 = arith.constant 0x7F800000 : f32
    %89 = vector.broadcast %cst_24 : f32 to vector<20x20xf32>
    %90 = arith.select %55, %60, %89 : vector<20x20xi1>, vector<20x20xf32>
    %cst_25 = arith.constant dense<0x7F800000> : vector<20xf32>
    %91 = vector.multi_reduction <minimumf>, %90, %cst_25 [1] : vector<20x20xf32> to vector<20xf32>
    %92 = vector.shape_cast %91 : vector<20xf32> to vector<20x1xf32>
    %cst_26 = arith.constant 2.000000e+00 : f32
    %93 = vector.broadcast %cst_26 : f32 to vector<20x1xf32>
    %94 = arith.cmpf oeq, %74, %93 : vector<20x1xf32>
    %cst_27 = arith.constant 2.000000e+00 : f32
    %95 = vector.broadcast %cst_27 : f32 to vector<20x1xf32>
    %96 = arith.cmpf ogt, %74, %95 : vector<20x1xf32>
    %cst_28 = arith.constant 0.000000e+00 : f32
    %97 = vector.broadcast %cst_28 : f32 to vector<20x1xf32>
    %98 = arith.cmpf ogt, %73, %97 : vector<20x1xf32>
    %99 = arith.andi %96, %98 : vector<20x1xi1>
    %cst_29 = arith.constant 0.000000e+00 : f32
    %100 = vector.broadcast %cst_29 : f32 to vector<20x1xf32>
    %101 = arith.cmpf ogt, %69, %100 : vector<20x1xf32>
    %102 = arith.andi %99, %101 : vector<20x1xi1>
    %103 = arith.ori %94, %102 : vector<20x1xi1>
    %104 = arith.subf %88, %92 : vector<20x1xf32>
    %105 = arith.subf %78, %83 : vector<20x1xf32>
    %106 = arith.select %94, %104, %105 : vector<20x1xi1>, vector<20x1xf32>
    %cst_30 = arith.constant 1.000000e+00 : f32
    %107 = vector.broadcast %cst_30 : f32 to vector<20x1xf32>
    %108 = arith.subf %46, %107 : vector<20x1xf32>
    %109 = math.absf %108 : vector<20x1xf32>
    %cst_31 = arith.constant 1.000000e+00 : f32
    %110 = vector.broadcast %cst_31 : f32 to vector<20x1xf32>
    %111 = arith.subf %0, %110 : vector<20x1xf32>
    %112 = math.absf %111 : vector<20x1xf32>
    %c0_32 = arith.constant 0 : index
    %c0_33 = arith.constant 0 : index
    %113 = vector.load %arg2[%c0_32, %c0_33] : memref<4x8xf32, #tpu.memory_space<vmem>>, vector<1x8xf32>
    %c1_34 = arith.constant 1 : index
    %c0_35 = arith.constant 0 : index
    %114 = vector.load %arg2[%c1_34, %c0_35] : memref<4x8xf32, #tpu.memory_space<vmem>>, vector<1x8xf32>
    %c2_36 = arith.constant 2 : index
    %c0_37 = arith.constant 0 : index
    %115 = vector.load %arg2[%c2_36, %c0_37] : memref<4x8xf32, #tpu.memory_space<vmem>>, vector<1x8xf32>
    %c3_38 = arith.constant 3 : index
    %c0_39 = arith.constant 0 : index
    %116 = vector.load %arg2[%c3_38, %c0_39] : memref<4x8xf32, #tpu.memory_space<vmem>>, vector<1x8xf32>
    %117 = vector.broadcast %43 : vector<20x1xf32> to vector<20x8xf32>
    %118 = vector.broadcast %113 : vector<1x8xf32> to vector<20x8xf32>
    %119 = arith.subf %117, %118 : vector<20x8xf32>
    %120 = math.absf %119 : vector<20x8xf32>
    %121 = vector.broadcast %106 : vector<20x1xf32> to vector<20x8xf32>
    %122 = vector.broadcast %114 : vector<1x8xf32> to vector<20x8xf32>
    %123 = arith.subf %121, %122 : vector<20x8xf32>
    %124 = math.absf %123 : vector<20x8xf32>
    %125 = arith.addf %120, %124 : vector<20x8xf32>
    %126 = vector.broadcast %109 : vector<20x1xf32> to vector<20x8xf32>
    %127 = vector.broadcast %115 : vector<1x8xf32> to vector<20x8xf32>
    %128 = arith.subf %126, %127 : vector<20x8xf32>
    %129 = math.absf %128 : vector<20x8xf32>
    %130 = arith.addf %125, %129 : vector<20x8xf32>
    %131 = vector.broadcast %112 : vector<20x1xf32> to vector<20x8xf32>
    %132 = vector.broadcast %116 : vector<1x8xf32> to vector<20x8xf32>
    %133 = arith.subf %131, %132 : vector<20x8xf32>
    %134 = math.absf %133 : vector<20x8xf32>
    %135 = arith.addf %130, %134 : vector<20x8xf32>
    %cst_40 = arith.constant dense<0x7F800000> : vector<20xf32>
    %136 = vector.multi_reduction <minimumf>, %135, %cst_40 [1] : vector<20x8xf32> to vector<20xf32>
    %137 = vector.shape_cast %136 : vector<20xf32> to vector<20x1xf32>
    %cst_41 = arith.constant 0x7F800000 : f32
    %138 = vector.broadcast %cst_41 : f32 to vector<20x1xf32>
    %139 = arith.select %103, %137, %138 : vector<20x1xi1>, vector<20x1xf32>
    %140 = tpu.iota {dimensions = array<i32: 0>} : vector<20x20xi32>
    %141 = tpu.iota {dimensions = array<i32: 1>} : vector<20x20xi32>
    %142 = arith.cmpi eq, %140, %141 : vector<20x20xi32>
    %cst_42 = arith.constant 0x7F800000 : f32
    %143 = vector.shape_cast %139 : vector<20x1xf32> to vector<20x1xf32>
    %144 = vector.broadcast %143 : vector<20x1xf32> to vector<20x20xf32>
    %145 = vector.broadcast %cst_42 : f32 to vector<20x20xf32>
    %146 = arith.select %142, %144, %145 : vector<20x20xi1>, vector<20x20xf32>
    %cst_43 = arith.constant dense<0x7F800000> : vector<20xf32>
    %147 = vector.multi_reduction <minimumf>, %146, %cst_43 [0] : vector<20x20xf32> to vector<20xf32>
    %148 = vector.shape_cast %147 : vector<20xf32> to vector<1x20xf32>
    %149 = arith.cmpi sle, %141, %140 : vector<20x20xi32>
    %cst_44 = arith.constant 0x7F800000 : f32
    %150 = vector.shape_cast %148 : vector<1x20xf32> to vector<1x20xf32>
    %151 = vector.broadcast %150 : vector<1x20xf32> to vector<20x20xf32>
    %152 = vector.broadcast %cst_44 : f32 to vector<20x20xf32>
    %153 = arith.select %149, %151, %152 : vector<20x20xi1>, vector<20x20xf32>
    %cst_45 = arith.constant dense<0x7F800000> : vector<20xf32>
    %154 = vector.multi_reduction <minimumf>, %153, %cst_45 [1] : vector<20x20xf32> to vector<20xf32>
    %155 = vector.shape_cast %154 : vector<20xf32> to vector<20x1xf32>
    %cst_46 = arith.constant 0.000000e+00 : f32
    %156 = vector.broadcast %cst_46 : f32 to vector<20x1xf32>
    %157 = arith.select %103, %155, %156 : vector<20x1xi1>, vector<20x1xf32>
    %cst_47 = arith.constant dense<0.000000e+00> : vector<1xf32>
    %158 = vector.multi_reduction <add>, %157, %cst_47 [0] : vector<20x1xf32> to vector<1xf32>
    %159 = vector.shape_cast %158 : vector<1xf32> to vector<1x1xf32>
    %c0_48 = arith.constant 0 : index
    %c0_49 = arith.constant 0 : index
    %160 = vector.load %arg3[%c0_48, %c0_49] : memref<1x1xf32, #tpu.memory_space<vmem>>, vector<1x1xf32>
    tpu.vector_store %arg3[%c0_48, %c0_49], %159 {strides = array<i32>} : memref<1x1xf32, #tpu.memory_space<vmem>>, vector<1x1xf32>,
    return
  }
}

</mosaic_0001>

<llo_original>
// kernel: forward.1
$region0: #{forward.1}
  #allocation0 [shape = 'u32[]', space=smem, size = 0x4, offset = 0x4, fixed_abs, tag = 'smem constant byte address 0x4 - core index']
  #allocation1 [shape = 'u32[144,128]{1,0:T(1,128)}', space=vmem, size = 0x12000, scoped, tag = 'internal scratch']
  %s0 = inlined_call_operand.vmem [shape: f32[20,2], index: 0, kind: input, shape index: {}]
  %s1 = inlined_call_operand.vmem [shape: f32[4,20], index: 1, kind: input, shape index: {}]
  %s2 = inlined_call_operand.vmem [shape: f32[4,8], index: 2, kind: input, shape index: {}]
  %s3 = inlined_call_operand.hbm [shape: f32[1,1], index: 3, kind: output, shape index: {}]
  %s4 = sld [smem:[#allocation0]]
  $region22: #{forward.1} parent=0
    _
  %s6 = ssub.s32 1, %s4
  %s7 = scalar_select 0, %s6, %s4
  $region1: #{forward.1} parent=0
    #allocation2 [shape = 'u8[512]{0}', space=vmem, size = 0x400, scoped, tag = 'output window, operand 0, single buffered']
    #allocation3 [shape = 's32[1]{0}', space=sflag, size = 0x4, scoped, tag = 'scoped memory for forward.1']
    %8 = vsyncpa [#allocation3], 0
    // Predicated region
    $region2: #{forward.1} parent=1 // pred_check
      _
    $region3: #{forward.1} parent=1 // pred_check_branch
      %10 = sbr.rel (0) target = $region5
    $region4: #{forward.1} parent=1 // pred_region
      _
    $region5: #{forward.1} parent=1 // pred_fallthru
      _
    // Predicated region
    $region6: #{forward.1} parent=1 // pred_check
      _
    $region7: #{forward.1} parent=1 // pred_check_branch
      %12 = sbr.rel (0) target = $region9
    $region8: #{forward.1} parent=1 // pred_region
      _
    $region9: #{forward.1} parent=1 // pred_fallthru
      _
    // Predicated region
    $region10: #{forward.1} parent=1 // pred_check
      _
    $region11: #{forward.1} parent=1 // pred_check_branch
      %14 = sbr.rel (0) target = $region13
    $region12: #{forward.1} parent=1 // pred_region
      _
    $region13: #{forward.1} parent=1 // pred_fallthru
      _
    %v15 = vld [vmem:[%s0] sm:$0xff]
    %v16 = vld [vmem:[%s0 + $0x8] sm:$0xff]
    %v17 = vld [vmem:[%s0 + $0x10] sm:$0xf]
    %v18 = vld [vmem:[%s1] sm:$0x1]
    %v19 = vld [vmem:[%s1 + $0x1] sm:$0x1]
    %v20 = vld [vmem:[%s1 + $0x2] sm:$0x1]
    %v21 = vld [vmem:[%s1 + $0x3] sm:$0x1]
    %v22 = vsub.f32 %v19, %v21
    %v23 = vsub.f32 %v18, %v20
    %v24 = vrcp.pop %v23
    %v25 = vmul.f32 %v22, %v24
    %v26 = vmul.f32 %v25, %v18
    %v27 = vsub.f32 %v19, %v26
    %v28 = vrcp.pop %v25
    %v29 = vmul.f32 1.0, %v28
    %v30 = vlaneseq
    %v31 = vand.u32 %v30, 127
    %v32 = vcvt.s32.f32 %v31
    %v33 = vmin.f32 %v18, %v20
    %v34 = vmax.f32 %v18, %v20
    %36 = vset.pattern.permute.xlu0 0
    %37 = vperm.xlu0 %36, %v15
    %v38 = vpop.permute.xlu0 %37
    %41 = vset.pattern.permute.xlu0 0
    %42 = vperm.xlu0 %41, %v16
    %v43 = vpop.permute.xlu0 %42
    %46 = vset.pattern.permute.xlu0 0
    %47 = vperm.xlu0 %46, %v17
    %v48 = vpop.permute.xlu0 %47
    %v50 = vlaneseq
    %v51 = vshrl.u32 %v50, 7
    %v52 = vsub.s32 0, %v51
    %v53 = vrot.slane %v33, %v52
    %vm54 = vcmp.gt.f32.partialorder %v38, %v53
    %vm55 = vcmp.gt.f32.partialorder %v43, %v53
    %vm56 = vcmp.gt.f32.partialorder %v48, %v53
    %v57 = vlaneseq
    %v58 = vshrl.u32 %v57, 7
    %v59 = vsub.s32 0, %v58
    %v60 = vrot.slane %v34, %v59
    %vm61 = vcmp.lt.f32.partialorder %v38, %v60
    %vm62 = vcmp.lt.f32.partialorder %v43, %v60
    %vm63 = vcmp.lt.f32.partialorder %v48, %v60
    %vm64 = vmand %vm54, %vm61
    %vm65 = vmand %vm55, %vm62
    %vm66 = vmand %vm56, %vm63
    %v67 = vsel %vm64, %v32, 19.0
    %v68 = vsel %vm65, %v32, 19.0
    %v69 = vsel %vm66, %v32, 19.0
    %vm70 = vcmask 162816
    %v71 = vsel %vm70, %v67, inf
    %72 = vmin.xlane.f32.xlu0 %v71
    %v73 = vpop.xlane.xlu0 %72
    %v74 = vsel %vm70, %v68, inf
    %75 = vmin.xlane.f32.xlu0 %v74
    %v76 = vpop.xlane.xlu0 %75
    %vm77 = vcmask 158720
    %v78 = vsel %vm77, %v69, inf
    %79 = vmin.xlane.f32.xlu0 %v78
    %v80 = vpop.xlane.xlu0 %79
    %vm81 = vcmp.eq.f32.partialorder %v32, %v73
    %vm82 = vcmp.eq.f32.partialorder %v32, %v76
    %vm83 = vcmp.eq.f32.partialorder %v32, %v80
    %v84 = vlaneseq
    %v85 = vshrl.u32 %v84, 7
    %v86 = vsub.s32 0, %v85
    %v87 = vrot.slane %v25, %v86
    %v88 = vmul.f32 %v87, %v38
    %v89 = vmul.f32 %v87, %v43
    %v90 = vmul.f32 %v87, %v48
    %v91 = vlaneseq
    %v92 = vshrl.u32 %v91, 7
    %v93 = vsub.s32 0, %v92
    %v94 = vrot.slane %v27, %v93
    %v95 = vadd.f32 %v88, %v94
    %v96 = vadd.f32 %v89, %v94
    %v97 = vadd.f32 %v90, %v94
    %v98 = vsel %vm81, %v95, 0.0
    %v99 = vsel %vm82, %v96, 0.0
    %v100 = vsel %vm83, %v97, 0.0
    %v101 = vsel %vm70, %v98, 0.0
    %102 = vadd.xlane.f32.xlu0 %v101
    %v103 = vpop.xlane.xlu0 %102
    %v104 = vsel %vm70, %v99, 0.0
    %105 = vadd.xlane.f32.xlu0 %v104
    %v106 = vpop.xlane.xlu0 %105
    %v107 = vsel %vm77, %v100, 0.0
    %108 = vadd.xlane.f32.xlu0 %v107
    %v109 = vpop.xlane.xlu0 %108
    %v110 = vsub.f32 %v15, %v103
    %v111 = vsub.f32 %v16, %v106
    %v112 = vsub.f32 %v17, %v109
    %v113 = vand.u32 2147483647, %v110
    %v114 = vand.u32 2147483647, %v111
    %v115 = vand.u32 2147483647, %v112
    %v116 = vadd.f32 %v15, %v103
    %v117 = vadd.f32 %v16, %v106
    %v118 = vadd.f32 %v17, %v109
    %v119 = vmul.f32 %v116, 0.5
    %v120 = vmul.f32 %v117, 0.5
    %v121 = vmul.f32 %v118, 0.5
    %v122 = vmin.f32 %v19, %v21
    %v123 = vmax.f32 %v19, %v21
    %125 = vset.pattern.permute.xlu0 1
    %126 = vperm.xlu0 %125, %v119
    %v127 = vpop.permute.xlu0 %126
    %130 = vset.pattern.permute.xlu0 1
    %131 = vperm.xlu0 %130, %v120
    %v132 = vpop.permute.xlu0 %131
    %135 = vset.pattern.permute.xlu0 1
    %136 = vperm.xlu0 %135, %v121
    %v137 = vpop.permute.xlu0 %136
    %v139 = vlaneseq
    %v140 = vshrl.u32 %v139, 7
    %v141 = vsub.s32 0, %v140
    %v142 = vrot.slane %v122, %v141
    %vm143 = vcmp.gt.f32.partialorder %v127, %v142
    %vm144 = vcmp.gt.f32.partialorder %v132, %v142
    %vm145 = vcmp.gt.f32.partialorder %v137, %v142
    %v146 = vlaneseq
    %v147 = vshrl.u32 %v146, 7
    %v148 = vsub.s32 0, %v147
    %v149 = vrot.slane %v123, %v148
    %vm150 = vcmp.lt.f32.partialorder %v127, %v149
    %vm151 = vcmp.lt.f32.partialorder %v132, %v149
    %vm152 = vcmp.lt.f32.partialorder %v137, %v149
    %vm153 = vmand %vm143, %vm150
    %vm154 = vmand %vm144, %vm151
    %vm155 = vmand %vm145, %vm152
    %v156 = vsub.f32 %v127, %v94
    %v157 = vsub.f32 %v132, %v94
    %v158 = vsub.f32 %v137, %v94
    %v159 = vlaneseq
    %v160 = vshrl.u32 %v159, 7
    %v161 = vsub.s32 0, %v160
    %v162 = vrot.slane %v29, %v161
    %v163 = vmul.f32 %v156, %v162
    %v164 = vmul.f32 %v157, %v162
    %v165 = vmul.f32 %v158, %v162
    %vm166 = vcmp.lt.f32.partialorder %v163, %v38
    %vm167 = vcmp.lt.f32.partialorder %v164, %v43
    %vm168 = vcmp.lt.f32.partialorder %v165, %v48
    %vm169 = vmand %vm153, %vm166
    %vm170 = vmand %vm154, %vm167
    %vm171 = vmand %vm155, %vm168
    %vm172 = vmxor %vm166, 1
    %vm173 = vmxor %vm167, 1
    %vm174 = vmxor %vm168, 1
    %vm175 = vmand %vm153, %vm172
    %vm176 = vmand %vm154, %vm173
    %vm177 = vmand %vm155, %vm174
    %v178 = vsel %vm169, 1, 0
    %v179 = vsel %vm170, 1, 0
    %v180 = vsel %vm171, 1, 0
    %v181 = vcvt.s32.f32 %v178
    %v182 = vcvt.s32.f32 %v179
    %v183 = vcvt.s32.f32 %v180
    %v184 = vsel %vm70, %v181, 0.0
    %185 = vadd.xlane.f32.xlu0 %v184
    %v186 = vpop.xlane.xlu0 %185
    %v187 = vsel %vm70, %v182, 0.0
    %188 = vadd.xlane.f32.xlu0 %v187
    %v189 = vpop.xlane.xlu0 %188
    %v190 = vsel %vm77, %v183, 0.0
    %191 = vadd.xlane.f32.xlu0 %v190
    %v192 = vpop.xlane.xlu0 %191
    %v193 = vsel %vm175, 1, 0
    %v194 = vsel %vm176, 1, 0
    %v195 = vsel %vm177, 1, 0
    %v196 = vcvt.s32.f32 %v193
    %v197 = vcvt.s32.f32 %v194
    %v198 = vcvt.s32.f32 %v195
    %v199 = vsel %vm70, %v196, 0.0
    %200 = vadd.xlane.f32.xlu0 %v199
    %v201 = vpop.xlane.xlu0 %200
    %v202 = vsel %vm70, %v197, 0.0
    %203 = vadd.xlane.f32.xlu0 %v202
    %v204 = vpop.xlane.xlu0 %203
    %v205 = vsel %vm77, %v198, 0.0
    %206 = vadd.xlane.f32.xlu0 %v205
    %v207 = vpop.xlane.xlu0 %206
    %v208 = vadd.f32 %v201, %v186
    %v209 = vadd.f32 %v204, %v189
    %v210 = vadd.f32 %v207, %v192
    %v211 = vsel %vm175, %v163, inf
    %v212 = vsel %vm176, %v164, inf
    %v213 = vsel %vm177, %v165, inf
    %v214 = vsel %vm70, %v211, inf
    %215 = vmin.xlane.f32.xlu0 %v214
    %v216 = vpop.xlane.xlu0 %215
    %v217 = vsel %vm70, %v212, inf
    %218 = vmin.xlane.f32.xlu0 %v217
    %v219 = vpop.xlane.xlu0 %218
    %v220 = vsel %vm77, %v213, inf
    %221 = vmin.xlane.f32.xlu0 %v220
    %v222 = vpop.xlane.xlu0 %221
    %v223 = vsel %vm169, %v163, -inf
    %v224 = vsel %vm170, %v164, -inf
    %v225 = vsel %vm171, %v165, -inf
    %v226 = vsel %vm70, %v223, -inf
    %227 = vmax.xlane.f32.xlu0 %v226
    %v228 = vpop.xlane.xlu0 %227
    %v229 = vsel %vm70, %v224, -inf
    %230 = vmax.xlane.f32.xlu0 %v229
    %v231 = vpop.xlane.xlu0 %230
    %v232 = vsel %vm77, %v225, -inf
    %233 = vmax.xlane.f32.xlu0 %v232
    %v234 = vpop.xlane.xlu0 %233
    %v235 = vsel %vm153, %v163, -inf
    %v236 = vsel %vm154, %v164, -inf
    %v237 = vsel %vm155, %v165, -inf
    %v238 = vsel %vm70, %v235, -inf
    %239 = vmax.xlane.f32.xlu0 %v238
    %v240 = vpop.xlane.xlu0 %239
    %v241 = vsel %vm70, %v236, -inf
    %242 = vmax.xlane.f32.xlu0 %v241
    %v243 = vpop.xlane.xlu0 %242
    %v244 = vsel %vm77, %v237, -inf
    %245 = vmax.xlane.f32.xlu0 %v244
    %v246 = vpop.xlane.xlu0 %245
    %v247 = vsel %vm153, %v163, inf
    %v248 = vsel %vm154, %v164, inf
    %v249 = vsel %vm155, %v165, inf
    %v250 = vsel %vm70, %v247, inf
    %251 = vmin.xlane.f32.xlu0 %v250
    %v252 = vpop.xlane.xlu0 %251
    %v253 = vsel %vm70, %v248, inf
    %254 = vmin.xlane.f32.xlu0 %v253
    %v255 = vpop.xlane.xlu0 %254
    %v256 = vsel %vm77, %v249, inf
    %257 = vmin.xlane.f32.xlu0 %v256
    %v258 = vpop.xlane.xlu0 %257
    %vm259 = vcmp.eq.f32.partialorder %v208, 2.0
    %vm260 = vcmp.eq.f32.partialorder %v209, 2.0
    %vm261 = vcmp.eq.f32.partialorder %v210, 2.0
    %vm262 = vcmp.gt.f32.partialorder %v208, 2.0
    %vm263 = vcmp.gt.f32.partialorder %v209, 2.0
    %vm264 = vcmp.gt.f32.partialorder %v210, 2.0
    %vm265 = vcmp.gt.f32.partialorder %v201, 0.0
    %vm266 = vcmp.gt.f32.partialorder %v204, 0.0
    %vm267 = vcmp.gt.f32.partialorder %v207, 0.0
    %vm268 = vmand %vm262, %vm265
    %vm269 = vmand %vm263, %vm266
    %vm270 = vmand %vm264, %vm267
    %vm271 = vcmp.gt.f32.partialorder %v186, 0.0
    %vm272 = vcmp.gt.f32.partialorder %v189, 0.0
    %vm273 = vcmp.gt.f32.partialorder %v192, 0.0
    %vm274 = vmand %vm268, %vm271
    %vm275 = vmand %vm269, %vm272
    %vm276 = vmand %vm270, %vm273
    %vm277 = vmor %vm259, %vm274
    %vm278 = vmor %vm260, %vm275
    %vm279 = vmor %vm261, %vm276
    %v280 = vsub.f32 %v240, %v252
    %v281 = vsub.f32 %v243, %v255
    %v282 = vsub.f32 %v246, %v258
    %v283 = vsub.f32 %v216, %v228
    %v284 = vsub.f32 %v219, %v231
    %v285 = vsub.f32 %v222, %v234
    %v286 = vsel %vm259, %v280, %v283
    %v287 = vsel %vm260, %v281, %v284
    %v288 = vsel %vm261, %v282, %v285
    %v289 = vsub.f32 %v119, 1.0
    %v290 = vsub.f32 %v120, 1.0
    %v291 = vsub.f32 %v121, 1.0
    %v292 = vand.u32 2147483647, %v289
    %v293 = vand.u32 2147483647, %v290
    %v294 = vand.u32 2147483647, %v291
    %v295 = vsub.f32 %v15, 1.0
    %v296 = vsub.f32 %v16, 1.0
    %v297 = vsub.f32 %v17, 1.0
    %v298 = vand.u32 2147483647, %v295
    %v299 = vand.u32 2147483647, %v296
    %v300 = vand.u32 2147483647, %v297
    %v301 = vld [vmem:[%s2] sm:$0x1]
    %v302 = vld [vmem:[%s2 + $0x1] sm:$0x1]
    %v303 = vld [vmem:[%s2 + $0x2] sm:$0x1]
    %v304 = vld [vmem:[%s2 + $0x3] sm:$0x1]
    %306 = vset.pattern.permute.xlu0 1
    %307 = vperm.xlu0 %306, %v113
    %v308 = vpop.permute.xlu0 %307
    %311 = vset.pattern.permute.xlu0 1
    %312 = vperm.xlu0 %311, %v114
    %v313 = vpop.permute.xlu0 %312
    %316 = vset.pattern.permute.xlu0 1
    %317 = vperm.xlu0 %316, %v115
    %v318 = vpop.permute.xlu0 %317
    %v320 = vlaneseq
    %v321 = vshrl.u32 %v320, 7
    %v322 = vsub.s32 0, %v321
    %v323 = vrot.slane %v301, %v322
    %v324 = vsub.f32 %v308, %v323
    %v325 = vsub.f32 %v313, %v323
    %v326 = vsub.f32 %v318, %v323
    %v327 = vand.u32 2147483647, %v324
    %v328 = vand.u32 2147483647, %v325
    %v329 = vand.u32 2147483647, %v326
    %v330 = vlaneseq
    %v331 = vshrl.u32 %v330, 7
    %v332 = vsub.s32 0, %v331
    %v333 = vrot.slane %v302, %v332
    %v334 = vsub.f32 %v286, %v333
    %v335 = vsub.f32 %v287, %v333
    %v336 = vsub.f32 %v288, %v333
    %v337 = vand.u32 2147483647, %v334
    %v338 = vand.u32 2147483647, %v335
    %v339 = vand.u32 2147483647, %v336
    %v340 = vadd.f32 %v327, %v337
    %v341 = vadd.f32 %v328, %v338
    %v342 = vadd.f32 %v329, %v339
    %344 = vset.pattern.permute.xlu0 1
    %345 = vperm.xlu0 %344, %v292
    %v346 = vpop.permute.xlu0 %345
    %349 = vset.pattern.permute.xlu0 1
    %350 = vperm.xlu0 %349, %v293
    %v351 = vpop.permute.xlu0 %350
    %354 = vset.pattern.permute.xlu0 1
    %355 = vperm.xlu0 %354, %v294
    %v356 = vpop.permute.xlu0 %355
    %v358 = vlaneseq
    %v359 = vshrl.u32 %v358, 7
    %v360 = vsub.s32 0, %v359
    %v361 = vrot.slane %v303, %v360
    %v362 = vsub.f32 %v346, %v361
    %v363 = vsub.f32 %v351, %v361
    %v364 = vsub.f32 %v356, %v361
    %v365 = vand.u32 2147483647, %v362
    %v366 = vand.u32 2147483647, %v363
    %v367 = vand.u32 2147483647, %v364
    %v368 = vadd.f32 %v340, %v365
    %v369 = vadd.f32 %v341, %v366
    %v370 = vadd.f32 %v342, %v367
    %372 = vset.pattern.permute.xlu0 0
    %373 = vperm.xlu0 %372, %v298
    %v374 = vpop.permute.xlu0 %373
    %377 = vset.pattern.permute.xlu0 0
    %378 = vperm.xlu0 %377, %v299
    %v379 = vpop.permute.xlu0 %378
    %382 = vset.pattern.permute.xlu0 0
    %383 = vperm.xlu0 %382, %v300
    %v384 = vpop.permute.xlu0 %383
    %v386 = vlaneseq
    %v387 = vshrl.u32 %v386, 7
    %v388 = vsub.s32 0, %v387
    %v389 = vrot.slane %v304, %v388
    %v390 = vsub.f32 %v374, %v389
    %v391 = vsub.f32 %v379, %v389
    %v392 = vsub.f32 %v384, %v389
    %v393 = vand.u32 2147483647, %v390
    %v394 = vand.u32 2147483647, %v391
    %v395 = vand.u32 2147483647, %v392
    %v396 = vadd.f32 %v368, %v393
    %v397 = vadd.f32 %v369, %v394
    %v398 = vadd.f32 %v370, %v395
    %vm399 = vcmask 64512
    %v400 = vsel %vm399, %v396, inf
    %401 = vmin.xlane.f32.xlu0 %v400
    %v402 = vpop.xlane.xlu0 %401
    %v403 = vsel %vm399, %v397, inf
    %404 = vmin.xlane.f32.xlu0 %v403
    %v405 = vpop.xlane.xlu0 %404
    %vm406 = vcmask 60416
    %v407 = vsel %vm406, %v398, inf
    %408 = vmin.xlane.f32.xlu0 %v407
    %v409 = vpop.xlane.xlu0 %408
    %v410 = vsel %vm277, %v402, inf
    %v411 = vsel %vm278, %v405, inf
    %v412 = vsel %vm279, %v409, inf
    %v413 = vlaneseq
    %v414 = vshrl.u32 %v413, 7
    %v415 = vadd.s32 %v414, 8
    %v416 = vadd.s32 %v414, 16
    %vm417 = vcmp.eq.s32.totalorder %v414, %v31
    %vm418 = vcmp.eq.s32.totalorder %v415, %v31
    %vm419 = vcmp.eq.s32.totalorder %v416, %v31
    %v420 = vsel %vm417, %v410, inf
    %v421 = vsel %vm418, %v411, inf
    %v422 = vsel %vm419, %v412, inf
    %v423 = vsel %vm70, %v420, inf
    %v424 = vsel %vm70, %v421, inf
    %v425 = vsel %vm77, %v422, inf
    %v426 = vmin.f32 %v423, %v424
    %v427 = vmin.f32 %v426, %v425
    %v428 = vrot.slane %v427, 4
    %v429 = vmin.f32 %v427, %v428
    %v430 = vrot.slane %v429, 2
    %v431 = vmin.f32 %v429, %v430
    %v432 = vrot.slane %v431, 1
    %v433 = vmin.f32 %v431, %v432
    %vm434 = vcmp.le.s32.totalorder %v31, %v414
    %vm435 = vcmp.le.s32.totalorder %v31, %v415
    %vm436 = vcmp.le.s32.totalorder %v31, %v416
    %v437 = vsel %vm434, %v433, inf
    %v438 = vsel %vm435, %v433, inf
    %v439 = vsel %vm436, %v433, inf
    %v440 = vsel %vm70, %v437, inf
    %441 = vmin.xlane.f32.xlu0 %v440
    %v442 = vpop.xlane.xlu0 %441
    %v443 = vsel %vm70, %v438, inf
    %444 = vmin.xlane.f32.xlu0 %v443
    %v445 = vpop.xlane.xlu0 %444
    %v446 = vsel %vm77, %v439, inf
    %447 = vmin.xlane.f32.xlu0 %v446
    %v448 = vpop.xlane.xlu0 %447
    %v449 = vsel %vm277, %v442, 0.0
    %v450 = vsel %vm278, %v445, 0.0
    %v451 = vsel %vm279, %v448, 0.0
    %v452 = vadd.f32 %v449, %v450
    %vm453 = vcmask 1043456
    %v454 = vsel %vm453, %v451, 0.0
    %v455 = vadd.f32 %v452, %v454
    %v456 = vrot.slane %v455, 4
    %v457 = vadd.f32 %v455, %v456
    %v458 = vrot.slane %v457, 2
    %v459 = vadd.f32 %v457, %v458
    %v460 = vrot.slane %v459, 1
    %v461 = vadd.f32 %v459, %v460
    %vm462 = vcmask 0
    %463 = vst.msk [vmem:[#allocation2] sm:$0x1] %vm462, %v461
    // Predicated region
    $region14: #{forward.1} parent=1 // pred_check
      _
    $region15: #{forward.1} parent=1 // pred_check_branch
      %465 = sbr.rel (0) target = $region17
    $region16: #{forward.1} parent=1 // pred_region
      %s467 = ssub.s32 16, 16
      %468 = vsyncadd [#allocation3], %s467
      %s470 = sshll.u32 [#allocation2], 4
      %s471 = int_to_ptr.vmem [resolvable:$true] %s470
      %473 = dma.vmem_to_hbm [thread:$0]  %s471, 16, %s3, [#allocation3]
    $region17: #{forward.1} parent=1 // pred_fallthru
      _
    // Predicated region
    $region18: #{forward.1} parent=1 // pred_check
      _
    $region19: #{forward.1} parent=1 // pred_check_branch
      %475 = sbr.rel (0) target = $region21
    $region20: #{forward.1} parent=1 // pred_region
      %476 = dma.done [#allocation3], 16
    $region21: #{forward.1} parent=1 // pred_fallthru
      _
    %477 = vsyncpa [#allocation3], 1

</llo_original>
